<compile_context>
chip_gen: v5e
topology: v5e:2x2
jax: 0.10.0
libtpu: 0.0.40
codegen_flags: <defaults>
</compile_context>

<pallas_src>
import functools

import jax
import jax.numpy as jnp
import numpy as np
from jax.experimental import pallas as pl
from jax.experimental.pallas import tpu as pltpu


def _up_matmul_kernel(x_ref, w_ref, b_ref, y_ref, *maybe_stats_ref,
                      apply_relu: bool, m_total: int, tile_m: int,
                      mask_tail: bool):
    """Fused ConvTranspose2d tile: one MXU matmul for all 4 sub-pixel outputs,
    + bias (+ ReLU + per-tile BatchNorm partial statistics)."""
    # (TM, 4*C_in) @ (4*C_in, 4*C_out) -> (TM, 4*C_out)   columns = [ee|eo|oe|oo]
    y = jnp.dot(x_ref[...], w_ref[...], preferred_element_type=jnp.float32)
    y = y + b_ref[...]                       # single bias add (bias pre-tiled to 4*C_out)
    if apply_relu:
        y = jnp.maximum(y, 0.0)
    y_ref[...] = y.astype(y_ref.dtype)       # direct lane-dense store

    if maybe_stats_ref:                      # BN branch: one-pass sum / sum-of-squares
        (stats_ref,) = maybe_stats_ref

        def _write_stats(vals):
            stats_ref[:, 0:1, :] = jnp.sum(vals, axis=0, keepdims=True)[None]
            stats_ref[:, 1:2, :] = jnp.sum(vals * vals, axis=0, keepdims=True)[None]

        if mask_tail:
            # Only the last tile contains padded rows; gate the masking work so the
            # other T-1 tiles skip the iota/compare/select entirely.
            is_last = pl.program_id(0) == pl.num_programs(0) - 1

            @pl.when(is_last)
            def _():
                rem = m_total - pl.program_id(0) * tile_m
                row = jax.lax.broadcasted_iota(jnp.int32, (tile_m, 1), 0)
                _write_stats(jnp.where(row < rem, y, 0.0))

            @pl.when(pl.program_id(0) != pl.num_programs(0) - 1)
            def _():
                _write_stats(y)
        else:
            _write_stats(y)


def _build_block_weight(weight, c_in, c_out, dtype):
    """torch ConvTranspose2d weight (C_in, C_out, 3, 3) -> (4*C_in, 4*C_out) block
    weight such that [x00|x01|x10|x11] @ Wb = [ee|eo|oe|oo] sub-pixel outputs:
      out[2m  ,2p  ] = x00 @ W[1,1]
      out[2m  ,2p+1] = x00 @ W[1,2] + x01 @ W[1,0]
      out[2m+1,2p  ] = x00 @ W[2,1] + x10 @ W[0,1]
      out[2m+1,2p+1] = x00 @ W[2,2] + x01 @ W[2,0] + x10 @ W[0,2] + x11 @ W[0,0]
    (taps: 0=x[m,p], 1=x[m,p+1], 2=x[m+1,p], 3=x[m+1,p+1])."""
    w = jnp.transpose(weight, (2, 3, 0, 1)).astype(jnp.float32)   # (ky, kx, C_in, C_out)
    wb = jnp.zeros((4, c_in, 4, c_out), jnp.float32)
    wb = wb.at[0, :, 0, :].set(w[1, 1])
    wb = wb.at[0, :, 1, :].set(w[1, 2])
    wb = wb.at[1, :, 1, :].set(w[1, 0])
    wb = wb.at[0, :, 2, :].set(w[2, 1])
    wb = wb.at[2, :, 2, :].set(w[0, 1])
    wb = wb.at[0, :, 3, :].set(w[2, 2])
    wb = wb.at[1, :, 3, :].set(w[2, 0])
    wb = wb.at[2, :, 3, :].set(w[0, 2])
    wb = wb.at[3, :, 3, :].set(w[0, 0])
    return wb.reshape(4 * c_in, 4 * c_out).astype(dtype)


def _vmem_bytes(tm, c4i, c4o, x_bytes):
    """Rough double-buffered VMEM footprint of one grid step."""
    return (2 * tm * c4i * x_bytes      # X tiles (double-buffered)
            + 2 * tm * c4o * 4          # y tiles, f32 (double-buffered)
            + 2 * c4i * c4o * x_bytes   # block weight (counted x2 to be safe)
            + (1 << 16))                # bias + stats + slop


def _choose_tile_m(m, c4i, c4o, x_bytes, tile_m):
    """Pick an M-row tile: sublane-aligned, >=2 grid steps (v7x megacore), fits VMEM."""
    tm = min(tile_m, m)
    tm = max(8, ((tm + 7) // 8) * 8)
    if m > 8:
        half = max(8, (((m + 1) // 2) + 7) // 8 * 8)
        tm = min(tm, half)              # guarantee T >= 2 so both v7x TCs get work
    budget = 40 * 1024 * 1024           # headroom inside v7x's 64 MiB physical VMEM
    while tm > 8 and _vmem_bytes(tm, c4i, c4o, x_bytes) > budget:
        tm = max(8, ((tm // 2) + 7) // 8 * 8)
    return tm


def up_forward(x_nchw, weight, bias, gamma=None, beta=None, *, last_layer=False,
               mxu_dtype=jnp.bfloat16, eps=1e-5, tile_m=1024):
    """Forward pass of `Up`.  x_nchw: (N, C_in, H, W); weight: (C_in, C_out, 3, 3)
    (torch ConvTranspose2d layout); bias/gamma/beta: (C_out,).
    Returns (N, C_out, 2H, 2W) float32."""
    N, C_in, H, W = x_nchw.shape
    C_out = weight.shape[1]
    # Pad tiny heads so the kernel lane dim 4*C_out >= 128 (lane-dense stores); the
    # zero-weight pad channels are sliced off after the kernel.
    C_out_k = C_out if 4 * C_out >= 128 else 32
    M = N * H * W
    C4i, C4o = 4 * C_in, 4 * C_out_k
    x_bytes = jnp.dtype(mxu_dtype).itemsize

    # --- pack the 4 shifted taps into one lane-packed matrix (M, 4*C_in), in bf16 ---
    # Cast BEFORE pad/concat so the XLA pack pass moves half the bytes.
    x = jnp.transpose(x_nchw, (0, 2, 3, 1)).astype(mxu_dtype)        # NHWC
    xp = jnp.pad(x, ((0, 0), (0, 1), (0, 1), (0, 0)))
    taps = jnp.concatenate(
        [xp[:, :H, :W, :], xp[:, :H, 1:, :], xp[:, 1:, :W, :], xp[:, 1:, 1:, :]],
        axis=-1)
    X = taps.reshape(M, C4i)
    # TODO(synk): each input pixel is still packed/read up to 4x here; building the
    # taps in-kernel from a single padded NHWC slab needs an overlapping (halo) window
    # or manual DMA, which is left to a future revision to keep the BlockSpecs
    # rectangular and the lowering robust.

    TM = _choose_tile_m(M, C4i, C4o, x_bytes, tile_m)
    T = pl.cdiv(M, TM)
    Mp = T * TM
    if Mp != M:
        X = jnp.pad(X, ((0, Mp - M), (0, 0)))

    if C_out_k != C_out:
        weight = jnp.pad(weight, ((0, 0), (0, C_out_k - C_out), (0, 0), (0, 0)))
        bias = jnp.pad(bias, (0, C_out_k - C_out))
        if not last_layer:
            gamma = jnp.pad(gamma, (0, C_out_k - C_out))
            beta = jnp.pad(beta, (0, C_out_k - C_out))

    Wb = _build_block_weight(weight, C_in, C_out_k, mxu_dtype)           # (4Ci, 4Co)
    b4 = jnp.tile(bias.astype(jnp.float32).reshape(1, C_out_k), (1, 4))  # (1, 4Co)

    x_spec = pl.BlockSpec((TM, C4i), lambda i: (i, 0))
    w_spec = pl.BlockSpec((C4i, C4o), lambda i: (0, 0))    # VMEM-resident across grid
    v_spec = pl.BlockSpec((1, C4o), lambda i: (0, 0))      # bias
    y_spec = pl.BlockSpec((TM, C4o), lambda i: (i, 0))
    vmem_limit = int(min(64 * 1024 * 1024,
                         max(32 * 1024 * 1024,
                             int(1.5 * _vmem_bytes(TM, C4i, C4o, x_bytes)))))
    comp = pltpu.CompilerParams(dimension_semantics=("parallel",),
                                vmem_limit_bytes=vmem_limit)

    kern = functools.partial(_up_matmul_kernel, apply_relu=not last_layer,
                             m_total=M, tile_m=TM, mask_tail=(Mp != M))

    if last_layer:
        y = pl.pallas_call(
            kern, grid=(T,),
            in_specs=[x_spec, w_spec, v_spec],
            out_specs=y_spec,
            out_shape=jax.ShapeDtypeStruct((Mp, C4o), jnp.float32),
            compiler_params=comp,
        )(X, Wb, b4)
        y = y[:M]
    else:
        y, stats = pl.pallas_call(
            kern, grid=(T,),
            in_specs=[x_spec, w_spec, v_spec],
            out_specs=(y_spec, pl.BlockSpec((1, 2, C4o), lambda i: (i, 0, 0))),
            out_shape=(jax.ShapeDtypeStruct((Mp, C4o), jnp.float32),
                       jax.ShapeDtypeStruct((T, 2, C4o), jnp.float32)),
            compiler_params=comp,
        )(X, Wb, b4)

        # --- combine per-tile partial stats -> global per-channel batch stats ------
        sums = stats[:, 0, :].reshape(T, 4, C_out_k).sum(axis=(0, 1))
        sumsq = stats[:, 1, :].reshape(T, 4, C_out_k).sum(axis=(0, 1))
        cnt = jnp.float32(4 * M)
        mean = sums / cnt
        var = jnp.maximum(sumsq / cnt - mean * mean, 0.0)    # biased var (training BN)
        inv = gamma.astype(jnp.float32) * jax.lax.rsqrt(var + eps)
        scale4 = jnp.tile(inv, 4)                                        # (4Co,)
        shift4 = jnp.tile(beta.astype(jnp.float32) - mean * inv, 4)      # (4Co,)
        # BN affine in plain XLA: it fuses into the de-interleave epilogue below,
        # removing the previous dedicated affine pallas_call (a pure r+w pass).
        y = y[:M] * scale4[None, :] + shift4[None, :]
        # TODO(synk): running_mean/running_var in-place module-state updates are a
        # PyTorch side effect with no impact on the forward output; not emitted.

    # --- sub-pixel interleave back to NCHW (stays in XLA) --------------------------
    # TODO(synk): the module contract returns NCHW; the lane-packed (M, 4*C_out)
    # kernel output cannot be scattered into it with a rectangular out-BlockSpec.
    y = y.reshape(N, H, W, 2, 2, C_out_k)
    if C_out_k != C_out:
        y = y[..., :C_out]
    y = jnp.transpose(y, (0, 1, 3, 2, 4, 5)).reshape(N, 2 * H, 2 * W, C_out)
    return jnp.transpose(y, (0, 3, 1, 2))


def _reference(x_nchw, weight, bias, gamma, beta, *, last_layer=False):
    """Pure-JAX f32 reference (ConvTranspose2d == lhs-dilated conv, flipped kernel)."""
    w_conv = jnp.flip(weight, axis=(2, 3)).transpose(1, 0, 2, 3)     # (C_out, C_in, 3, 3)
    y = jax.lax.conv_general_dilated(
        x_nchw.astype(jnp.float32), w_conv.astype(jnp.float32),
        window_strides=(1, 1), padding=((1, 2), (1, 2)),
        lhs_dilation=(2, 2), rhs_dilation=(1, 1),
        dimension_numbers=('NCHW', 'OIHW', 'NCHW'),
        precision=jax.lax.Precision.HIGHEST)
    y = y + bias.reshape(1, -1, 1, 1)
    if not last_layer:
        y = jnp.maximum(y, 0.0)
        mean = jnp.mean(y, axis=(0, 2, 3), keepdims=True)
        var = jnp.mean((y - mean) ** 2, axis=(0, 2, 3), keepdims=True)
        y = (y - mean) / jnp.sqrt(var + 1e-5)
        y = y * gamma.reshape(1, -1, 1, 1) + beta.reshape(1, -1, 1, 1)
    return y


if __name__ == "__main__":
    N, C_in, C_out, H, W = 2, 4, 8, 16, 16

    key = jax.random.PRNGKey(0)
    kx, kw, kb, kg, kbe = jax.random.split(key, 5)
    x = jax.random.normal(kx, (N, C_in, H, W), dtype=jnp.float32)
    weight = 0.1 * jax.random.normal(kw, (C_in, C_out, 3, 3), dtype=jnp.float32)
    bias = 0.1 * jax.random.normal(kb, (C_out,), dtype=jnp.float32)
    gamma = 1.0 + 0.1 * jax.random.normal(kg, (C_out,), dtype=jnp.float32)
    beta = 0.1 * jax.random.normal(kbe, (C_out,), dtype=jnp.float32)

    for last in (False, True):
        ref = jax.block_until_ready(
            _reference(x, weight, bias, gamma, beta, last_layer=last))
        # f32 MXU path: tight check vs the f32 reference.
        # bf16 MXU path (default): looser tolerance — bf16 operand rounding (~2^-9)
        # is amplified by the BatchNorm 1/std rescale.
        for mxu_dtype, tol in ((jnp.float32, 5e-3), (jnp.bfloat16, 5e-2)):
            fwd = jax.jit(functools.partial(up_forward, last_layer=last,
                                            mxu_dtype=mxu_dtype))
            out = jax.block_until_ready(fwd(x, weight, bias, gamma, beta))
            assert out.shape == (N, C_out, 2 * H, 2 * W), out.shape
            np.testing.assert_allclose(np.asarray(out), np.asarray(ref),
                                       rtol=tol, atol=tol)

    print("KERNEL_OK")
</pallas_src>

<mosaic_0001>
module attributes {stable_mosaic.version = 11 : i64} {
  func.func @_up_matmul_kernel(%arg0: i32, %arg1: memref<256x16xf32, #tpu.memory_space<vmem>>, %arg2: memref<16x128xf32, #tpu.memory_space<vmem>>, %arg3: memref<1x128xf32, #tpu.memory_space<vmem>>, %arg4: memref<256x128xf32, #tpu.memory_space<vmem>>, %arg5: memref<1x2x128xf32, #tpu.memory_space<vmem>>) attributes {dimension_semantics = [#tpu.dimension_semantics<parallel>], iteration_bounds = array<i64: 2>, scalar_prefetch = 0 : i64, scratch_operands = 0 : i64, tpu.core_type = #tpu.core_type<tc>, window_params = [{transform_indices = @transform_0, window_bounds = array<i64: 256, 16>}, {pipeline_mode = #tpu.pipeline_mode<synchronous>, transform_indices = @transform_1, window_bounds = array<i64: 16, 128>}, {pipeline_mode = #tpu.pipeline_mode<synchronous>, transform_indices = @transform_2, window_bounds = array<i64: 1, 128>}, {transform_indices = @transform_3, window_bounds = array<i64: 256, 128>}, {transform_indices = @transform_4, window_bounds = array<i64: 1, 2, 128>}]} {
    %c0 = arith.constant 0 : index
    %c0_0 = arith.constant 0 : index
    %0 = vector.load %arg1[%c0, %c0_0] : memref<256x16xf32, #tpu.memory_space<vmem>>, vector<256x16xf32>
    %c0_1 = arith.constant 0 : index
    %c0_2 = arith.constant 0 : index
    %1 = vector.load %arg2[%c0_1, %c0_2] : memref<16x128xf32, #tpu.memory_space<vmem>>, vector<16x128xf32>
    %cst = arith.constant dense<0.000000e+00> : vector<256x128xf32>
    %2 = tpu.matmul %0, %1, %cst {dimension_numbers = #tpu.dot_dimension_numbers<[1], [0], [0], [1], [0, 0, 1, 1], [], []>} : vector<256x16xf32>, vector<16x128xf32>, vector<256x128xf32> -> vector<256x128xf32>
    %c0_3 = arith.constant 0 : index
    %c0_4 = arith.constant 0 : index
    %3 = vector.load %arg3[%c0_3, %c0_4] : memref<1x128xf32, #tpu.memory_space<vmem>>, vector<1x128xf32>
    %4 = vector.broadcast %3 : vector<1x128xf32> to vector<256x128xf32>
    %5 = arith.addf %2, %4 : vector<256x128xf32>
    %cst_5 = arith.constant 0.000000e+00 : f32
    %6 = vector.broadcast %cst_5 : f32 to vector<256x128xf32>
    %7 = arith.maximumf %5, %6 : vector<256x128xf32>
    %c0_6 = arith.constant 0 : index
    %c0_7 = arith.constant 0 : index
    %8 = vector.load %arg4[%c0_6, %c0_7] : memref<256x128xf32, #tpu.memory_space<vmem>>, vector<256x128xf32>
    tpu.vector_store %arg4[%c0_6, %c0_7], %7 {strides = array<i32>} : memref<256x128xf32, #tpu.memory_space<vmem>>, vector<256x128xf32>,
    %cst_8 = arith.constant dense<0.000000e+00> : vector<128xf32>
    %9 = vector.multi_reduction <add>, %7, %cst_8 [0] : vector<256x128xf32> to vector<128xf32>
    %10 = vector.shape_cast %9 : vector<128xf32> to vector<1x128xf32>
    %11 = vector.shape_cast %10 : vector<1x128xf32> to vector<1x1x128xf32>
    %c0_9 = arith.constant 0 : index
    %c0_10 = arith.constant 0 : index
    %c0_11 = arith.constant 0 : index
    %12 = vector.load %arg5[%c0_9, %c0_10, %c0_11] : memref<1x2x128xf32, #tpu.memory_space<vmem>>, vector<1x1x128xf32>
    tpu.vector_store %arg5[%c0_9, %c0_10, %c0_11], %11 {strides = array<i32>} : memref<1x2x128xf32, #tpu.memory_space<vmem>>, vector<1x1x128xf32>,
    %13 = arith.mulf %7, %7 : vector<256x128xf32>
    %cst_12 = arith.constant dense<0.000000e+00> : vector<128xf32>
    %14 = vector.multi_reduction <add>, %13, %cst_12 [0] : vector<256x128xf32> to vector<128xf32>
    %15 = vector.shape_cast %14 : vector<128xf32> to vector<1x128xf32>
    %16 = vector.shape_cast %15 : vector<1x128xf32> to vector<1x1x128xf32>
    %c0_13 = arith.constant 0 : index
    %c1 = arith.constant 1 : index
    %c0_14 = arith.constant 0 : index
    %17 = vector.load %arg5[%c0_13, %c1, %c0_14] : memref<1x2x128xf32, #tpu.memory_space<vmem>>, vector<1x1x128xf32>
    tpu.vector_store %arg5[%c0_13, %c1, %c0_14], %16 {strides = array<i32>} : memref<1x2x128xf32, #tpu.memory_space<vmem>>, vector<1x1x128xf32>,
    return
  }
  func.func @transform_0(%arg0: i32) -> (i32, i32) {
    %c0_i32 = arith.constant 0 : i32
    %c0_i32_0 = arith.constant 0 : i32
    return %arg0, %c0_i32 : i32, i32
  }
  func.func @transform_1(%arg0: i32) -> (i32, i32) {
    %c0_i32 = arith.constant 0 : i32
    %c0_i32_0 = arith.constant 0 : i32
    %c0_i32_1 = arith.constant 0 : i32
    return %c0_i32, %c0_i32_0 : i32, i32
  }
  func.func @transform_2(%arg0: i32) -> (i32, i32) {
    %c0_i32 = arith.constant 0 : i32
    %c0_i32_0 = arith.constant 0 : i32
    %c0_i32_1 = arith.constant 0 : i32
    return %c0_i32, %c0_i32_0 : i32, i32
  }
  func.func @transform_3(%arg0: i32) -> (i32, i32) {
    %c0_i32 = arith.constant 0 : i32
    %c0_i32_0 = arith.constant 0 : i32
    return %arg0, %c0_i32 : i32, i32
  }
  func.func @transform_4(%arg0: i32) -> (i32, i32, i32) {
    %c0_i32 = arith.constant 0 : i32
    %c0_i32_0 = arith.constant 0 : i32
    %c0_i32_1 = arith.constant 0 : i32
    return %arg0, %c0_i32, %c0_i32_0 : i32, i32, i32
  }
}

</mosaic_0001>

<llo_original>
// kernel: up_forward.1
$region0: #{up_forward.1}
  #allocation0 [shape = 'u32[]', space=smem, size = 0x4, offset = 0x4, fixed_abs, tag = 'smem constant byte address 0x4 - core index']
  #allocation1 [shape = 'u32[72,128]{1,0:T(1,128)}', space=vmem, size = 0x9000, scoped, tag = 'internal scratch']
  %s0 = inlined_call_operand.vmem [shape: f32[512,16], index: 0, kind: input, shape index: {}]
  %s1 = inlined_call_operand.vmem [shape: f32[16,128], index: 1, kind: input, shape index: {}]
  %s2 = inlined_call_operand.vmem [shape: f32[1,128], index: 2, kind: input, shape index: {}]
  %s3 = inlined_call_operand.vmem [shape: f32[512,128], index: 3, kind: output, shape index: {0}]
  %s4 = inlined_call_operand.vmem [shape: f32[2,2,128], index: 4, kind: output, shape index: {1}]
  %5 = xla_tuple %s3, %s4
  %s6 = sld [smem:[#allocation0]]
  $region53: #{up_forward.1} parent=0
    _
  %s8 = ssub.s32 1, %s6
  %s9 = scalar_select 0, %s8, %s6
  loop: start=0, step=1, limit=4
  $region2: #{up_forward.1} parent=0 // loop_pre_header
    _
  $region3: #{up_forward.1} parent=0 // loop_header
    %s11 = sphi 0, %s15
    %p12 = scmp.ge.s32.totalorder %s11, 4
    %s21 = sphi 0, %s23
    %s24 = sphi 0, %s21
    %s25 = sphi 0, %s24
    %s41 = sphi 0, %s25
    %s45 = sphi 0, %s45
    %s47 = sphi 0, %s45
    %s48 = sphi 0, %s47
    %s62 = sphi 0, %s48
    %s66 = sphi 0, %s66
    %s68 = sphi 0, %s66
    %s69 = sphi 0, %s68
    %s83 = sphi 0, %s69
    %s89 = sphi 0, %s91
    %s92 = sphi 0, %s89
    %s93 = sphi 0, %s92
    %s109 = sphi 0, %s93
    %s115 = sphi 0, %s117
    %s118 = sphi 0, %s115
    %s119 = sphi 0, %s118
    %s135 = sphi 0, %s119
  $region4: #{up_forward.1} parent=0 // loop_header_branch
    %14 = sbr.rel (%p12) target = $region8
  $region5: #{up_forward.1} parent=0 // loop_body
    %s16 = ssub.s32 %s11, 1
    %s17 = ssub.s32 %s11, 2
    %s18 = sadd.s32 %s11, 1
    %s19 = ssub.s32 %s11, %s18
    %p20 = scmp.eq.s32.totalorder %s19, 0
    %s22 = sadd.s32 %s21, 1
    %s23 = scalar_select %p20, %s21, %s22
    %p26 = pneg %p20
    %p27 = scmp.eq.s32.totalorder %s11, 1
    %p28 = por %p26, %p27
    %p29 = scmp.ne.s32.totalorder %s21, %s24
    %p30 = scmp.eq.s32.totalorder %s11, 0
    %p31 = por %p29, %p30
    %p32 = scmp.ne.s32.totalorder %s21, %s24
    %p33 = scmp.eq.s32.totalorder %s16, 1
    %p34 = por %p32, %p33
    %p35 = scmp.ne.s32.totalorder %s24, %s25
    %p36 = scmp.eq.s32.totalorder %s16, 0
    %p37 = por %p35, %p36
    %p38 = scmp.ne.s32.totalorder %s24, %s25
    %p39 = scmp.eq.s32.totalorder %s17, 1
    %p40 = por %p38, %p39
    %p42 = scmp.ne.s32.totalorder %s25, %s41
    %p43 = scmp.eq.s32.totalorder %s17, 0
    %p44 = por %p42, %p43
    %s46 = sadd.s32 %s45, 1
    %p49 = scmp.eq.s32.totalorder %s11, 1
    %p50 = scmp.ne.s32.totalorder %s45, %s47
    %p51 = scmp.eq.s32.totalorder %s11, 0
    %p52 = por %p50, %p51
    %p53 = scmp.ne.s32.totalorder %s45, %s47
    %p54 = scmp.eq.s32.totalorder %s16, 1
    %p55 = por %p53, %p54
    %p56 = scmp.ne.s32.totalorder %s47, %s48
    %p57 = scmp.eq.s32.totalorder %s16, 0
    %p58 = por %p56, %p57
    %p59 = scmp.ne.s32.totalorder %s47, %s48
    %p60 = scmp.eq.s32.totalorder %s17, 1
    %p61 = por %p59, %p60
    %p63 = scmp.ne.s32.totalorder %s48, %s62
    %p64 = scmp.eq.s32.totalorder %s17, 0
    %p65 = por %p63, %p64
    %s67 = sadd.s32 %s66, 1
    %p70 = scmp.eq.s32.totalorder %s11, 1
    %p71 = scmp.ne.s32.totalorder %s66, %s68
    %p72 = scmp.eq.s32.totalorder %s11, 0
    %p73 = por %p71, %p72
    %p74 = scmp.ne.s32.totalorder %s66, %s68
    %p75 = scmp.eq.s32.totalorder %s16, 1
    %p76 = por %p74, %p75
    %p77 = scmp.ne.s32.totalorder %s68, %s69
    %p78 = scmp.eq.s32.totalorder %s16, 0
    %p79 = por %p77, %p78
    %p80 = scmp.ne.s32.totalorder %s68, %s69
    %p81 = scmp.eq.s32.totalorder %s17, 1
    %p82 = por %p80, %p81
    %p84 = scmp.ne.s32.totalorder %s69, %s83
    %p85 = scmp.eq.s32.totalorder %s17, 0
    %p86 = por %p84, %p85
    %s87 = ssub.s32 %s11, %s18
    %p88 = scmp.eq.s32.totalorder %s87, 0
    %s90 = sadd.s32 %s89, 1
    %s91 = scalar_select %p88, %s89, %s90
    %p94 = pneg %p88
    %p95 = scmp.eq.s32.totalorder %s11, 1
    %p96 = por %p94, %p95
    %p97 = scmp.ne.s32.totalorder %s89, %s92
    %p98 = scmp.eq.s32.totalorder %s11, 0
    %p99 = por %p97, %p98
    %p100 = scmp.ne.s32.totalorder %s89, %s92
    %p101 = scmp.eq.s32.totalorder %s16, 1
    %p102 = por %p100, %p101
    %p103 = scmp.ne.s32.totalorder %s92, %s93
    %p104 = scmp.eq.s32.totalorder %s16, 0
    %p105 = por %p103, %p104
    %p106 = scmp.ne.s32.totalorder %s92, %s93
    %p107 = scmp.eq.s32.totalorder %s17, 1
    %p108 = por %p106, %p107
    %p110 = scmp.ne.s32.totalorder %s93, %s109
    %p111 = scmp.eq.s32.totalorder %s17, 0
    %p112 = por %p110, %p111
    %s113 = ssub.s32 %s11, %s18
    %p114 = scmp.eq.s32.totalorder %s113, 0
    %s116 = sadd.s32 %s115, 1
    %s117 = scalar_select %p114, %s115, %s116
    %p120 = pneg %p114
    %p121 = scmp.eq.s32.totalorder %s11, 1
    %p122 = por %p120, %p121
    %p123 = scmp.ne.s32.totalorder %s115, %s118
    %p124 = scmp.eq.s32.totalorder %s11, 0
    %p125 = por %p123, %p124
    %p126 = scmp.ne.s32.totalorder %s115, %s118
    %p127 = scmp.eq.s32.totalorder %s16, 1
    %p128 = por %p126, %p127
    %p129 = scmp.ne.s32.totalorder %s118, %s119
    %p130 = scmp.eq.s32.totalorder %s16, 0
    %p131 = por %p129, %p130
    %p132 = scmp.ne.s32.totalorder %s118, %s119
    %p133 = scmp.eq.s32.totalorder %s17, 1
    %p134 = por %p132, %p133
    %p136 = scmp.ne.s32.totalorder %s119, %s135
    %p137 = scmp.eq.s32.totalorder %s17, 0
    %p138 = por %p136, %p137
    %p139 = scmp.le.s32.totalorder 1, %s11
    %p140 = scmp.lt.s32.totalorder %s11, 3
    %p141 = pnand %p139, %p140
    %p142 = pneg %p141
    // Predicated region
    $region9: #{up_forward.1} parent=5 // pred_check
      _
    $region10: #{up_forward.1} parent=5 // pred_check_branch
      %144 = sbr.rel (%p141) target = $region12
    $region11: #{up_forward.1} parent=5 // pred_region
      %s145 = ssub.s32 %s11, 1
      // Predicated region
      $region13: #{up_forward.1} parent=11 // pred_check
        %p146 = pneg %p58
      $region14: #{up_forward.1} parent=11 // pred_check_branch
        %148 = sbr.rel (%p146) target = $region16
      $region15: #{up_forward.1} parent=11 // pred_region
        _
      $region16: #{up_forward.1} parent=11 // pred_fallthru
        _
      // Predicated region
      $region17: #{up_forward.1} parent=11 // pred_check
        %p149 = pneg %p79
      $region18: #{up_forward.1} parent=11 // pred_check_branch
        %151 = sbr.rel (%p149) target = $region20
      $region19: #{up_forward.1} parent=11 // pred_region
        _
      $region20: #{up_forward.1} parent=11 // pred_fallthru
        _
    $region12: #{up_forward.1} parent=5 // pred_fallthru
      _
    %p152 = scmp.lt.s32.totalorder %s11, 2
    // Predicated region
    $region21: #{up_forward.1} parent=5 // pred_check
      %p153 = pneg %p152
    $region22: #{up_forward.1} parent=5 // pred_check_branch
      %155 = sbr.rel (%p153) target = $region24
    $region23: #{up_forward.1} parent=5 // pred_region
      // Predicated region
      $region25: #{up_forward.1} parent=23 // pred_check
        %p156 = pneg %p31
      $region26: #{up_forward.1} parent=23 // pred_check_branch
        %158 = sbr.rel (%p156) target = $region28
      $region27: #{up_forward.1} parent=23 // pred_region
        %s159 = smul.u32 32, %s11
        %p160 = scmp.lt.s32.totalorder %s159, 63
        %s161 = scalar_select %p160, %s159, 63
        %s162 = smul.addr %s161, 8
        %s163 = scalar_lea.vmem %s0, %s162
        %s164 = smul.u32 32, %s11
      $region28: #{up_forward.1} parent=23 // pred_fallthru
        _
    $region24: #{up_forward.1} parent=5 // pred_fallthru
      _
    %p165 = scmp.le.s32.totalorder 1, %s11
    %p166 = scmp.lt.s32.totalorder %s11, 3
    %p167 = pnand %p165, %p166
    %p168 = pneg %p167
    // Predicated region
    $region29: #{up_forward.1} parent=5 // pred_check
      _
    $region30: #{up_forward.1} parent=5 // pred_check_branch
      %170 = sbr.rel (%p167) target = $region32
    $region31: #{up_forward.1} parent=5 // pred_region
      %s171 = ssub.s32 %s11, 1
      %s172 = smul.u32 32, %s16
      %p173 = scmp.lt.s32.totalorder %s172, 63
      %s174 = scalar_select %p173, %s172, 63
      %s175 = smul.addr %s174, 8
      %s176 = scalar_lea.vmem %s0, %s175
      %p177 = pneg %p37
      %p178 = pneg %p34
      %p179 = pneg %p58
      %p180 = pneg %p55
      %p181 = pneg %p79
      %p182 = pneg %p76
      %p183 = pneg %p105
      %p184 = pneg %p102
      %s185 = smul.u32 32, %s16
      %p186 = scmp.lt.s32.totalorder %s185, 63
      %s187 = scalar_select %p186, %s185, 63
      %s188 = smul.addr %s187, 8
      %s189 = scalar_lea.vmem %s3, %s188
      %p190 = pneg %p131
      %p191 = pneg %p128
      %p192 = scmp.lt.s32.totalorder %s16, 1
      %s193 = scalar_select %p192, %s16, 1
      %s194 = smul.addr %s193, 2
      %s195 = scalar_lea.vmem %s4, %s194
      %s196 = smul.u32 32, %s16
      %p197 = scmp.lt.s32.totalorder %s196, 63
      %s198 = scalar_select %p197, %s196, 63
      %s199 = smul.addr %s198, 8
      %s200 = scalar_lea.vmem %s0, %s199
      %s201 = smul.u32 32, %s16
      %s202 = smul.u32 32, %s16
      %p203 = scmp.lt.s32.totalorder %s202, 63
      %s204 = scalar_select %p203, %s202, 63
      %s205 = smul.addr %s204, 8
      %s206 = scalar_lea.vmem %s3, %s205
      %s207 = smul.u32 32, %s16
      %p208 = scmp.lt.s32.totalorder %s16, 1
      %s209 = scalar_select %p208, %s16, 1
      %s210 = smul.addr %s209, 2
      %s211 = scalar_lea.vmem %s4, %s210
      %v212 = vld [vmem:[%s200] sm:$0xff]
      %v213 = vld [vmem:[%s200 + $0x8] sm:$0xff]
      %v214 = vld [vmem:[%s200 + $0x10] sm:$0xff]
      %v215 = vld [vmem:[%s200 + $0x18] sm:$0xff]
      %v216 = vld [vmem:[%s200 + $0x20] sm:$0xff]
      %v217 = vld [vmem:[%s200 + $0x28] sm:$0xff]
      %v218 = vld [vmem:[%s200 + $0x30] sm:$0xff]
      %v219 = vld [vmem:[%s200 + $0x38] sm:$0xff]
      %v220 = vld [vmem:[%s200 + $0x40] sm:$0xff]
      %v221 = vld [vmem:[%s200 + $0x48] sm:$0xff]
      %v222 = vld [vmem:[%s200 + $0x50] sm:$0xff]
      %v223 = vld [vmem:[%s200 + $0x58] sm:$0xff]
      %v224 = vld [vmem:[%s200 + $0x60] sm:$0xff]
      %v225 = vld [vmem:[%s200 + $0x68] sm:$0xff]
      %v226 = vld [vmem:[%s200 + $0x70] sm:$0xff]
      %v227 = vld [vmem:[%s200 + $0x78] sm:$0xff]
      %v228 = vld [vmem:[%s200 + $0x80] sm:$0xff]
      %v229 = vld [vmem:[%s200 + $0x88] sm:$0xff]
      %v230 = vld [vmem:[%s200 + $0x90] sm:$0xff]
      %v231 = vld [vmem:[%s200 + $0x98] sm:$0xff]
      %v232 = vld [vmem:[%s200 + $0xa0] sm:$0xff]
      %v233 = vld [vmem:[%s200 + $0xa8] sm:$0xff]
      %v234 = vld [vmem:[%s200 + $0xb0] sm:$0xff]
      %v235 = vld [vmem:[%s200 + $0xb8] sm:$0xff]
      %v236 = vld [vmem:[%s200 + $0xc0] sm:$0xff]
      %v237 = vld [vmem:[%s200 + $0xc8] sm:$0xff]
      %v238 = vld [vmem:[%s200 + $0xd0] sm:$0xff]
      %v239 = vld [vmem:[%s200 + $0xd8] sm:$0xff]
      %v240 = vld [vmem:[%s200 + $0xe0] sm:$0xff]
      %v241 = vld [vmem:[%s200 + $0xe8] sm:$0xff]
      %v242 = vld [vmem:[%s200 + $0xf0] sm:$0xff]
      %v243 = vld [vmem:[%s200 + $0xf8] sm:$0xff]
      %v244 = vld [vmem:[%s1] sm:$0xff]
      %v245 = vld [vmem:[%s1 + $0x8] sm:$0xff]
      %v246 = vld [vmem:[%s2] sm:$0x1]
      %v248 = vperm.slane %v246, 0
      %vm250 = vcmask 130048
      %v252 = vsel %vm250, %v212, 0
      %v255 = vsel %vm250, %v213, 0
      %v258 = vsel %vm250, %v214, 0
      %v261 = vsel %vm250, %v215, 0
      %v264 = vsel %vm250, %v216, 0
      %v267 = vsel %vm250, %v217, 0
      %v270 = vsel %vm250, %v218, 0
      %v273 = vsel %vm250, %v219, 0
      %v276 = vsel %vm250, %v220, 0
      %v279 = vsel %vm250, %v221, 0
      %v282 = vsel %vm250, %v222, 0
      %v285 = vsel %vm250, %v223, 0
      %v288 = vsel %vm250, %v224, 0
      %v291 = vsel %vm250, %v225, 0
      %v294 = vsel %vm250, %v226, 0
      %v297 = vsel %vm250, %v227, 0
      %v300 = vsel %vm250, %v228, 0
      %v303 = vsel %vm250, %v229, 0
      %v306 = vsel %vm250, %v230, 0
      %v309 = vsel %vm250, %v231, 0
      %v312 = vsel %vm250, %v232, 0
      %v315 = vsel %vm250, %v233, 0
      %v318 = vsel %vm250, %v234, 0
      %v321 = vsel %vm250, %v235, 0
      %v324 = vsel %vm250, %v236, 0
      %v327 = vsel %vm250, %v237, 0
      %v330 = vsel %vm250, %v238, 0
      %v333 = vsel %vm250, %v239, 0
      %v336 = vsel %vm250, %v240, 0
      %v339 = vsel %vm250, %v241, 0
      %v342 = vsel %vm250, %v242, 0
      %v345 = vsel %vm250, %v243, 0
      %347 = vmatpush.msra.mxu0 0.0
      %348 = vmatpush.msra.mxu0 0.0
      %349 = vmatpush.msra.mxu0 0.0
      %350 = vmatpush.msra.mxu0 0.0
      %351 = vmatpush.msra.mxu0 0.0
      %352 = vmatpush.msra.mxu0 0.0
      %353 = vmatpush.msra.mxu0 0.0
      %354 = vmatpush.msra.mxu0 0.0
      %355 = vmatpush.msra.mxu0 0.0
      %356 = vmatpush.msra.mxu0 0.0
      %357 = vmatpush.msra.mxu0 0.0
      %358 = vmatpush.msra.mxu0 0.0
      %359 = vmatpush.msra.mxu0 0.0
      %360 = vmatpush.msra.mxu0 0.0
      %361 = vmatpush.msra.mxu0 %v245
      %362 = vmatpush.msra.mxu0 %v244
      %363 = vmatmul.f32.gmra.mxu0 %v252
      %v364 = vpop.f32.mrf.mxu0
      %v365 = vadd.f32 %v248, %v364
      %366 = vmatmul.f32.gmra.mxu0 %v255
      %v367 = vpop.f32.mrf.mxu0
      %v368 = vadd.f32 %v248, %v367
      %369 = vmatmul.f32.gmra.mxu0 %v258
      %v370 = vpop.f32.mrf.mxu0
      %v371 = vadd.f32 %v248, %v370
      %372 = vmatmul.f32.gmra.mxu0 %v261
      %v373 = vpop.f32.mrf.mxu0
      %v374 = vadd.f32 %v248, %v373
      %375 = vmatmul.f32.gmra.mxu0 %v264
      %v376 = vpop.f32.mrf.mxu0
      %v377 = vadd.f32 %v248, %v376
      %378 = vmatmul.f32.gmra.mxu0 %v267
      %v379 = vpop.f32.mrf.mxu0
      %v380 = vadd.f32 %v248, %v379
      %381 = vmatmul.f32.gmra.mxu0 %v270
      %v382 = vpop.f32.mrf.mxu0
      %v383 = vadd.f32 %v248, %v382
      %384 = vmatmul.f32.gmra.mxu0 %v273
      %v385 = vpop.f32.mrf.mxu0
      %v386 = vadd.f32 %v248, %v385
      %387 = vmatmul.f32.gmra.mxu0 %v276
      %v388 = vpop.f32.mrf.mxu0
      %v389 = vadd.f32 %v248, %v388
      %390 = vmatmul.f32.gmra.mxu0 %v279
      %v391 = vpop.f32.mrf.mxu0
      %v392 = vadd.f32 %v248, %v391
      %393 = vmatmul.f32.gmra.mxu0 %v282
      %v394 = vpop.f32.mrf.mxu0
      %v395 = vadd.f32 %v248, %v394
      %396 = vmatmul.f32.gmra.mxu0 %v285
      %v397 = vpop.f32.mrf.mxu0
      %v398 = vadd.f32 %v248, %v397
      %399 = vmatmul.f32.gmra.mxu0 %v288
      %v400 = vpop.f32.mrf.mxu0
      %v401 = vadd.f32 %v248, %v400
      %402 = vmatmul.f32.gmra.mxu0 %v291
      %v403 = vpop.f32.mrf.mxu0
      %v404 = vadd.f32 %v248, %v403
      %405 = vmatmul.f32.gmra.mxu0 %v294
      %v406 = vpop.f32.mrf.mxu0
      %v407 = vadd.f32 %v248, %v406
      %408 = vmatmul.f32.gmra.mxu0 %v297
      %v409 = vpop.f32.mrf.mxu0
      %v410 = vadd.f32 %v248, %v409
      %411 = vmatmul.f32.gmra.mxu0 %v300
      %v412 = vpop.f32.mrf.mxu0
      %v413 = vadd.f32 %v248, %v412
      %414 = vmatmul.f32.gmra.mxu0 %v303
      %v415 = vpop.f32.mrf.mxu0
      %v416 = vadd.f32 %v248, %v415
      %417 = vmatmul.f32.gmra.mxu0 %v306
      %v418 = vpop.f32.mrf.mxu0
      %v419 = vadd.f32 %v248, %v418
      %420 = vmatmul.f32.gmra.mxu0 %v309
      %v421 = vpop.f32.mrf.mxu0
      %v422 = vadd.f32 %v248, %v421
      %423 = vmatmul.f32.gmra.mxu0 %v312
      %v424 = vpop.f32.mrf.mxu0
      %v425 = vadd.f32 %v248, %v424
      %426 = vmatmul.f32.gmra.mxu0 %v315
      %v427 = vpop.f32.mrf.mxu0
      %v428 = vadd.f32 %v248, %v427
      %429 = vmatmul.f32.gmra.mxu0 %v318
      %v430 = vpop.f32.mrf.mxu0
      %v431 = vadd.f32 %v248, %v430
      %432 = vmatmul.f32.gmra.mxu0 %v321
      %v433 = vpop.f32.mrf.mxu0
      %v434 = vadd.f32 %v248, %v433
      %435 = vmatmul.f32.gmra.mxu0 %v324
      %v436 = vpop.f32.mrf.mxu0
      %v437 = vadd.f32 %v248, %v436
      %438 = vmatmul.f32.gmra.mxu0 %v327
      %v439 = vpop.f32.mrf.mxu0
      %v440 = vadd.f32 %v248, %v439
      %441 = vmatmul.f32.gmra.mxu0 %v330
      %v442 = vpop.f32.mrf.mxu0
      %v443 = vadd.f32 %v248, %v442
      %444 = vmatmul.f32.gmra.mxu0 %v333
      %v445 = vpop.f32.mrf.mxu0
      %v446 = vadd.f32 %v248, %v445
      %447 = vmatmul.f32.gmra.mxu0 %v336
      %v448 = vpop.f32.mrf.mxu0
      %v449 = vadd.f32 %v248, %v448
      %450 = vmatmul.f32.gmra.mxu0 %v339
      %v451 = vpop.f32.mrf.mxu0
      %v452 = vadd.f32 %v248, %v451
      %453 = vmatmul.f32.gmra.mxu0 %v342
      %v454 = vpop.f32.mrf.mxu0
      %v455 = vadd.f32 %v248, %v454
      %456 = vmatmul.f32.gmra.mxu0 %v345
      %v457 = vpop.f32.mrf.mxu0
      %v458 = vadd.f32 %v248, %v457
      %459 = vdwg.mxu0
      %v460 = vmax.f32 %v365, 0.0
      %v461 = vmax.f32 %v368, 0.0
      %v462 = vmax.f32 %v371, 0.0
      %v463 = vmax.f32 %v374, 0.0
      %v464 = vmax.f32 %v377, 0.0
      %v465 = vmax.f32 %v380, 0.0
      %v466 = vmax.f32 %v383, 0.0
      %v467 = vmax.f32 %v386, 0.0
      %v468 = vmax.f32 %v389, 0.0
      %v469 = vmax.f32 %v392, 0.0
      %v470 = vmax.f32 %v395, 0.0
      %v471 = vmax.f32 %v398, 0.0
      %v472 = vmax.f32 %v401, 0.0
      %v473 = vmax.f32 %v404, 0.0
      %v474 = vmax.f32 %v407, 0.0
      %v475 = vmax.f32 %v410, 0.0
      %v476 = vmax.f32 %v413, 0.0
      %v477 = vmax.f32 %v416, 0.0
      %v478 = vmax.f32 %v419, 0.0
      %v479 = vmax.f32 %v422, 0.0
      %v480 = vmax.f32 %v425, 0.0
      %v481 = vmax.f32 %v428, 0.0
      %v482 = vmax.f32 %v431, 0.0
      %v483 = vmax.f32 %v434, 0.0
      %v484 = vmax.f32 %v437, 0.0
      %v485 = vmax.f32 %v440, 0.0
      %v486 = vmax.f32 %v443, 0.0
      %v487 = vmax.f32 %v446, 0.0
      %v488 = vmax.f32 %v449, 0.0
      %v489 = vmax.f32 %v452, 0.0
      %v490 = vmax.f32 %v455, 0.0
      %v491 = vmax.f32 %v458, 0.0
      %492 = vst [vmem:[%s206] sm:$0xff] %v460
      %493 = vst [vmem:[%s206 + $0x8] sm:$0xff] %v461
      %494 = vst [vmem:[%s206 + $0x10] sm:$0xff] %v462
      %495 = vst [vmem:[%s206 + $0x18] sm:$0xff] %v463
      %496 = vst [vmem:[%s206 + $0x20] sm:$0xff] %v464
      %497 = vst [vmem:[%s206 + $0x28] sm:$0xff] %v465
      %498 = vst [vmem:[%s206 + $0x30] sm:$0xff] %v466
      %499 = vst [vmem:[%s206 + $0x38] sm:$0xff] %v467
      %500 = vst [vmem:[%s206 + $0x40] sm:$0xff] %v468
      %501 = vst [vmem:[%s206 + $0x48] sm:$0xff] %v469
      %502 = vst [vmem:[%s206 + $0x50] sm:$0xff] %v470
      %503 = vst [vmem:[%s206 + $0x58] sm:$0xff] %v471
      %504 = vst [vmem:[%s206 + $0x60] sm:$0xff] %v472
      %505 = vst [vmem:[%s206 + $0x68] sm:$0xff] %v473
      %506 = vst [vmem:[%s206 + $0x70] sm:$0xff] %v474
      %507 = vst [vmem:[%s206 + $0x78] sm:$0xff] %v475
      %508 = vst [vmem:[%s206 + $0x80] sm:$0xff] %v476
      %509 = vst [vmem:[%s206 + $0x88] sm:$0xff] %v477
      %510 = vst [vmem:[%s206 + $0x90] sm:$0xff] %v478
      %511 = vst [vmem:[%s206 + $0x98] sm:$0xff] %v479
      %512 = vst [vmem:[%s206 + $0xa0] sm:$0xff] %v480
      %513 = vst [vmem:[%s206 + $0xa8] sm:$0xff] %v481
      %514 = vst [vmem:[%s206 + $0xb0] sm:$0xff] %v482
      %515 = vst [vmem:[%s206 + $0xb8] sm:$0xff] %v483
      %516 = vst [vmem:[%s206 + $0xc0] sm:$0xff] %v484
      %517 = vst [vmem:[%s206 + $0xc8] sm:$0xff] %v485
      %518 = vst [vmem:[%s206 + $0xd0] sm:$0xff] %v486
      %519 = vst [vmem:[%s206 + $0xd8] sm:$0xff] %v487
      %520 = vst [vmem:[%s206 + $0xe0] sm:$0xff] %v488
      %521 = vst [vmem:[%s206 + $0xe8] sm:$0xff] %v489
      %522 = vst [vmem:[%s206 + $0xf0] sm:$0xff] %v490
      %523 = vst [vmem:[%s206 + $0xf8] sm:$0xff] %v491
      %v524 = vadd.f32 %v460, %v461
      %v525 = vadd.f32 %v524, %v462
      %v526 = vadd.f32 %v525, %v463
      %v527 = vadd.f32 %v526, %v464
      %v528 = vadd.f32 %v527, %v465
      %v529 = vadd.f32 %v528, %v466
      %v530 = vadd.f32 %v529, %v467
      %v531 = vadd.f32 %v530, %v468
      %v532 = vadd.f32 %v531, %v469
      %v533 = vadd.f32 %v532, %v470
      %v534 = vadd.f32 %v533, %v471
      %v535 = vadd.f32 %v534, %v472
      %v536 = vadd.f32 %v535, %v473
      %v537 = vadd.f32 %v536, %v474
      %v538 = vadd.f32 %v537, %v475
      %v539 = vadd.f32 %v538, %v476
      %v540 = vadd.f32 %v539, %v477
      %v541 = vadd.f32 %v540, %v478
      %v542 = vadd.f32 %v541, %v479
      %v543 = vadd.f32 %v542, %v480
      %v544 = vadd.f32 %v543, %v481
      %v545 = vadd.f32 %v544, %v482
      %v546 = vadd.f32 %v545, %v483
      %v547 = vadd.f32 %v546, %v484
      %v548 = vadd.f32 %v547, %v485
      %v549 = vadd.f32 %v548, %v486
      %v550 = vadd.f32 %v549, %v487
      %v551 = vadd.f32 %v550, %v488
      %v552 = vadd.f32 %v551, %v489
      %v553 = vadd.f32 %v552, %v490
      %v554 = vadd.f32 %v553, %v491
      %v555 = vrot.slane %v554, 4
      %v556 = vadd.f32 %v554, %v555
      %v557 = vrot.slane %v556, 2
      %v558 = vadd.f32 %v556, %v557
      %v559 = vrot.slane %v558, 1
      %v560 = vadd.f32 %v558, %v559
      %561 = vst [vmem:[%s211] sm:$0x1] %v560
      %v562 = vmul.f32 %v460, %v460
      %v563 = vmul.f32 %v461, %v461
      %v564 = vmul.f32 %v462, %v462
      %v565 = vmul.f32 %v463, %v463
      %v566 = vmul.f32 %v464, %v464
      %v567 = vmul.f32 %v465, %v465
      %v568 = vmul.f32 %v466, %v466
      %v569 = vmul.f32 %v467, %v467
      %v570 = vmul.f32 %v468, %v468
      %v571 = vmul.f32 %v469, %v469
      %v572 = vmul.f32 %v470, %v470
      %v573 = vmul.f32 %v471, %v471
      %v574 = vmul.f32 %v472, %v472
      %v575 = vmul.f32 %v473, %v473
      %v576 = vmul.f32 %v474, %v474
      %v577 = vmul.f32 %v475, %v475
      %v578 = vmul.f32 %v476, %v476
      %v579 = vmul.f32 %v477, %v477
      %v580 = vmul.f32 %v478, %v478
      %v581 = vmul.f32 %v479, %v479
      %v582 = vmul.f32 %v480, %v480
      %v583 = vmul.f32 %v481, %v481
      %v584 = vmul.f32 %v482, %v482
      %v585 = vmul.f32 %v483, %v483
      %v586 = vmul.f32 %v484, %v484
      %v587 = vmul.f32 %v485, %v485
      %v588 = vmul.f32 %v486, %v486
      %v589 = vmul.f32 %v487, %v487
      %v590 = vmul.f32 %v488, %v488
      %v591 = vmul.f32 %v489, %v489
      %v592 = vmul.f32 %v490, %v490
      %v593 = vmul.f32 %v491, %v491
      %v594 = vadd.f32 %v562, %v563
      %v595 = vadd.f32 %v594, %v564
      %v596 = vadd.f32 %v595, %v565
      %v597 = vadd.f32 %v596, %v566
      %v598 = vadd.f32 %v597, %v567
      %v599 = vadd.f32 %v598, %v568
      %v600 = vadd.f32 %v599, %v569
      %v601 = vadd.f32 %v600, %v570
      %v602 = vadd.f32 %v601, %v571
      %v603 = vadd.f32 %v602, %v572
      %v604 = vadd.f32 %v603, %v573
      %v605 = vadd.f32 %v604, %v574
      %v606 = vadd.f32 %v605, %v575
      %v607 = vadd.f32 %v606, %v576
      %v608 = vadd.f32 %v607, %v577
      %v609 = vadd.f32 %v608, %v578
      %v610 = vadd.f32 %v609, %v579
      %v611 = vadd.f32 %v610, %v580
      %v612 = vadd.f32 %v611, %v581
      %v613 = vadd.f32 %v612, %v582
      %v614 = vadd.f32 %v613, %v583
      %v615 = vadd.f32 %v614, %v584
      %v616 = vadd.f32 %v615, %v585
      %v617 = vadd.f32 %v616, %v586
      %v618 = vadd.f32 %v617, %v587
      %v619 = vadd.f32 %v618, %v588
      %v620 = vadd.f32 %v619, %v589
      %v621 = vadd.f32 %v620, %v590
      %v622 = vadd.f32 %v621, %v591
      %v623 = vadd.f32 %v622, %v592
      %v624 = vadd.f32 %v623, %v593
      %v625 = vrot.slane %v624, 4
      %v626 = vadd.f32 %v624, %v625
      %v627 = vrot.slane %v626, 2
      %v628 = vadd.f32 %v626, %v627
      %v629 = vrot.slane %v628, 1
      %v630 = vadd.f32 %v628, %v629
      %631 = vst [vmem:[%s211 + $0x1] sm:$0x1] %v630
      %s632 = smul.u32 32, %s16
      %p633 = scmp.lt.s32.totalorder %s632, 63
      %s634 = scalar_select %p633, %s632, 63
      %s635 = smul.addr %s634, 8
      %s636 = scalar_lea.vmem %s3, %s635
      %p637 = scmp.lt.s32.totalorder %s16, 1
      %s638 = scalar_select %p637, %s16, 1
      %s639 = smul.addr %s638, 2
      %s640 = scalar_lea.vmem %s4, %s639
      // Predicated region
      $region33: #{up_forward.1} parent=31 // pred_check
        %p641 = pneg %p102
      $region34: #{up_forward.1} parent=31 // pred_check_branch
        %643 = sbr.rel (%p641) target = $region36
      $region35: #{up_forward.1} parent=31 // pred_region
        %s644 = smul.u32 32, %s16
      $region36: #{up_forward.1} parent=31 // pred_fallthru
        _
      // Predicated region
      $region37: #{up_forward.1} parent=31 // pred_check
        %p645 = pneg %p128
      $region38: #{up_forward.1} parent=31 // pred_check_branch
        %647 = sbr.rel (%p645) target = $region40
      $region39: #{up_forward.1} parent=31 // pred_region
        _
      $region40: #{up_forward.1} parent=31 // pred_fallthru
        _
    $region32: #{up_forward.1} parent=5 // pred_fallthru
      _
    %p648 = scmp.le.s32.totalorder 2, %s11
    // Predicated region
    $region41: #{up_forward.1} parent=5 // pred_check
      %p649 = pneg %p648
    $region42: #{up_forward.1} parent=5 // pred_check_branch
      %651 = sbr.rel (%p649) target = $region44
    $region43: #{up_forward.1} parent=5 // pred_region
      %s652 = ssub.s32 %s11, 2
      // Predicated region
      $region45: #{up_forward.1} parent=43 // pred_check
        %p653 = pneg %p108
      $region46: #{up_forward.1} parent=43 // pred_check_branch
        %655 = sbr.rel (%p653) target = $region48
      $region47: #{up_forward.1} parent=43 // pred_region
        %s656 = smul.u32 32, %s17
        %p657 = scmp.lt.s32.totalorder %s656, 63
        %s658 = scalar_select %p657, %s656, 63
        %s659 = smul.addr %s658, 8
        %s660 = scalar_lea.vmem %s3, %s659
      $region48: #{up_forward.1} parent=43 // pred_fallthru
        _
      // Predicated region
      $region49: #{up_forward.1} parent=43 // pred_check
        %p661 = pneg %p134
      $region50: #{up_forward.1} parent=43 // pred_check_branch
        %663 = sbr.rel (%p661) target = $region52
      $region51: #{up_forward.1} parent=43 // pred_region
        %p664 = scmp.lt.s32.totalorder %s17, 1
        %s665 = scalar_select %p664, %s17, 1
        %s666 = smul.addr %s665, 2
        %s667 = scalar_lea.vmem %s4, %s666
      $region52: #{up_forward.1} parent=43 // pred_fallthru
        _
    $region44: #{up_forward.1} parent=5 // pred_fallthru
      _
  $region6: #{up_forward.1} parent=0 // loop_footer
    %s15 = sadd.s32 1, %s11
  $region7: #{up_forward.1} parent=0 // loop_footer_branch
    %10 = sbr.rel target = $region3
  $region8: #{up_forward.1} parent=0 // loop_exit
    _

</llo_original>
